<compile_context>
chip_gen: v7x
topology: tpu7x:2x2x1
jax: 0.10.0
libtpu: 0.0.40
codegen_flags: <defaults>
</compile_context>

<pallas_src>
import functools

import jax
import jax.numpy as jnp
from jax.experimental import pallas as pl
from jax.experimental.pallas import tpu as pltpu


_LANE = 128
_SUBLANE = 8
# Problems smaller than this don't benefit from splitting across TensorCores.
_MIN_SPLIT_BYTES = 512 * 1024


def _chip_config():
    """Returns (target_block_bytes, vmem_limit_bytes_or_None, num_tensorcores,
    has_native_bf16_valu) for the current TPU generation."""
    try:
        kind = jax.devices()[0].device_kind.lower()
    except Exception:  # pragma: no cover - defensive
        kind = ""
    if "v5 lite" in kind or "v5lite" in kind or "v5e" in kind:
        # v5e: 0.82 TB/s HBM, 16 MiB scoped-VMEM default, no bf16 VALU.
        return 2 << 20, 14 << 20, 1, False
    if "v6" in kind or "trillium" in kind:
        # v6e: 1.4 TB/s HBM, 128 MiB physical VMEM -> 4 MiB blocks, roomy limit.
        return 4 << 20, 64 << 20, 1, True
    if "v7" in kind or "tpu7" in kind or "7x" in kind:
        # v7x: 3.2 TB/s HBM but only 64 MiB per-TC VMEM; 8 MiB blocks
        # double-buffered (x + out) ~= 32 MiB, safe under a 48 MiB limit.
        return 8 << 20, 48 << 20, 2, True
    # Unknown / older generation: conservative defaults, rely on compiler default limit.
    return 2 << 20, None, 1, False


def _pick_col_tile(C: int, max_cols: int) -> int:
    """Largest sensible column tile <= max_cols, preferring full-width tails."""
    if C <= max_cols:
        return C
    t = max(_LANE, (max_cols // _LANE) * _LANE)
    # Prefer a 128-multiple that divides C exactly (no ragged tail), searching
    # down to half the target so blocks stay large.
    cand = t
    while cand * 2 > t and cand >= _LANE:
        if C % cand == 0:
            return cand
        cand -= _LANE
    # Otherwise prefer a tile whose tail remainder is still a multiple of 128
    # (keeps every store unmasked and lane-dense).
    cand = t
    while cand * 2 > t and cand >= _LANE:
        if (C % cand) % _LANE == 0:
            return cand
        cand -= _LANE
    return t


def _choose_tiles(B: int, C: int, itemsize: int, target_bytes: int, num_cores: int):
    """Pick (row_tile, col_tile) for a [B, C] streaming add.

    Guarantees the (8, 128) BlockSpec constraint: row_tile is a multiple of the
    dtype-native sublane count or equals B; col_tile is a multiple of 128 or
    equals C.
    """
    # Sub-32-bit dtypes pack 2/4 rows per sublane -> native row tile 16/32.
    sub = _SUBLANE * max(1, 4 // itemsize)
    target_elems = max(_LANE, target_bytes // itemsize)

    if B * C <= target_elems:
        tb, tc = B, C
    else:
        rows_fit = target_elems // C
        if rows_fit >= sub:
            # Rows alone give a big enough block; keep the full lane-dense row.
            tb = min((rows_fit // sub) * sub, B)
            tc = C
        else:
            # A single row-slab is already over budget -> tile the feature axis too.
            tb = B if B < sub else sub
            tc = _pick_col_tile(C, max(_LANE, target_elems // tb))

    # v7x: make sure both TensorCores get work when the problem is non-trivial
    # but would otherwise collapse to a single grid block.
    if (num_cores > 1 and tb >= B and tc >= C
            and B * C * itemsize > _MIN_SPLIT_BYTES):
        if C >= 2 * _LANE:
            # Split the (lane-dense) feature axis into two 128-aligned halves.
            tc = ((C + 2 * _LANE - 1) // (2 * _LANE)) * _LANE
        elif B >= 2 * sub:
            tb = ((B + 2 * sub - 1) // (2 * sub)) * sub

    return tb, tc


def _pos_enc_kernel(x_ref, emb_ref, o_ref, *, compute_dtype):
    # x_ref / o_ref: (TB, TC) tile of the flattened [B, S*D] input / output.
    # emb_ref:       (1, TC) matching slice of the flattened positional table,
    #                broadcast over the TB batch rows by the VPU add.
    x = x_ref[...].astype(compute_dtype)
    e = emb_ref[...].astype(compute_dtype)
    o_ref[...] = (x + e).astype(o_ref.dtype)


def positional_encoding_learn(x: jax.Array, embed_weight: jax.Array,
                              *, donate_x: bool = False) -> jax.Array:
    """x: [B, S, D]; embed_weight: [max_len, D]. Returns x + embed_weight[:S]."""
    B, S, D = x.shape
    C = S * D

    target_bytes, vmem_limit, num_cores, native_lowp = _chip_config()
    itemsize = jnp.dtype(x.dtype).itemsize
    tb, tc = _choose_tiles(B, C, itemsize, target_bytes, num_cores)

    # Column/feature axis OUTER (slow), batch-row axis INNER (fast): the emb
    # block index only depends on the outer axis, so its DMA is not repeated
    # across the inner row steps.
    grid = (pl.cdiv(C, tc), pl.cdiv(B, tb))

    # f32 inputs: add directly. Sub-32-bit inputs: add natively where the VPU
    # supports it (v6e/v7x), otherwise upcast to f32 (v5e).
    compute_dtype = x.dtype if (itemsize == 4 or native_lowp) else jnp.float32

    # Layout plumbing (cheap): contiguous reshape of x is a bitcast; the emb
    # slice+reshape touches only S*D elements.
    x2 = x.reshape(B, C)
    emb = embed_weight[:S, :].reshape(1, C)

    params = dict(dimension_semantics=("parallel", "parallel"))
    if vmem_limit is not None:
        params["vmem_limit_bytes"] = vmem_limit

    out2 = pl.pallas_call(
        functools.partial(_pos_enc_kernel, compute_dtype=compute_dtype),
        out_shape=jax.ShapeDtypeStruct((B, C), x.dtype),
        grid_spec=pltpu.PrefetchScalarGridSpec(
            num_scalar_prefetch=0,
            grid=grid,
            in_specs=[
                # (TB, TC) slab of x; block index (row, col) from (col-step, row-step).
                pl.BlockSpec((tb, tc), lambda j, i: (i, j)),
                # Matching (1, TC) slice of the positional row; constant over i.
                pl.BlockSpec((1, tc), lambda j, i: (0, j)),
            ],
            out_specs=pl.BlockSpec((tb, tc), lambda j, i: (i, j)),
        ),
        compiler_params=pltpu.CompilerParams(**params),
        # Optional: reuse x's HBM buffer for the output when the caller donates x.
        input_output_aliases=({0: 0} if donate_x else {}),
    )(x2, emb)

    return out2.reshape(B, S, D)


if __name__ == "__main__":
    key = jax.random.PRNGKey(0)

    # Small shapes consistent with the module: batch=2, seq=8, d_model=32.
    B, S, D = 2, 8, 32
    MAX_LEN = 64  # stands in for max_len=5000 at small scale
    kx, kw, key = jax.random.split(key, 3)
    x = jax.random.normal(kx, (B, S, D), dtype=jnp.float32)
    # Deterministic init matching nn.init.uniform_ (U[0, 1)) on the embedding weight.
    embed_weight = jax.random.uniform(kw, (MAX_LEN, D), dtype=jnp.float32)

    out = jax.block_until_ready(positional_encoding_learn(x, embed_weight))
    ref = x + embed_weight[:S, :][None, :, :]
    assert out.shape == (B, S, D)
    assert jnp.allclose(out, ref, atol=1e-6), "mismatch vs reference (small case)"

    # Larger deterministic check that exercises the tiled multi-step grid and the
    # column-outer / row-inner ordering (and the v7x 2-core split); ~8 MB of data.
    B2, S2, D2, MAX_LEN2 = 16, 512, 256, 1024
    kx2, kw2, key = jax.random.split(key, 3)
    x_big = jax.random.normal(kx2, (B2, S2, D2), dtype=jnp.float32)
    w_big = jax.random.uniform(kw2, (MAX_LEN2, D2), dtype=jnp.float32)
    out_big = jax.block_until_ready(positional_encoding_learn(x_big, w_big))
    ref_big = x_big + w_big[:S2, :][None, :, :]
    assert jnp.allclose(out_big, ref_big, atol=1e-6), "mismatch vs reference (tiled case)"

    # bf16 check (exercises the dtype-aware row tiling and the native/low-precision
    # add path on v6e/v7x vs. f32 upcast on v5e).
    B3, S3, D3, MAX_LEN3 = 4, 128, 64, 256
    kx3, kw3, _ = jax.random.split(key, 3)
    x_bf = jax.random.normal(kx3, (B3, S3, D3), dtype=jnp.float32).astype(jnp.bfloat16)
    w_bf = jax.random.uniform(kw3, (MAX_LEN3, D3), dtype=jnp.float32).astype(jnp.bfloat16)
    out_bf = jax.block_until_ready(positional_encoding_learn(x_bf, w_bf))
    ref_bf = (x_bf.astype(jnp.float32) + w_bf[:S3, :].astype(jnp.float32)[None, :, :])
    assert jnp.allclose(out_bf.astype(jnp.float32), ref_bf, atol=0.1), \
        "mismatch vs reference (bf16 case)"

    print("KERNEL_OK")
</pallas_src>

<mosaic_0001>
module attributes {stable_mosaic.version = 11 : i64} {
  func.func @_pos_enc_kernel(%arg0: i32, %arg1: i32, %arg2: memref<2x256xf32, #tpu.memory_space<vmem>>, %arg3: memref<1x256xf32, #tpu.memory_space<vmem>>, %arg4: memref<2x256xf32, #tpu.memory_space<vmem>>) attributes {dimension_semantics = [#tpu.dimension_semantics<parallel>, #tpu.dimension_semantics<parallel>], iteration_bounds = array<i64: 1, 1>, scalar_prefetch = 0 : i64, scratch_operands = 0 : i64, tpu.core_type = #tpu.core_type<tc>, window_params = [{transform_indices = @transform_0, window_bounds = array<i64: 2, 256>}, {transform_indices = @transform_1, window_bounds = array<i64: 1, 256>}, {transform_indices = @transform_2, window_bounds = array<i64: 2, 256>}]} {
    %c0 = arith.constant 0 : index
    %c0_0 = arith.constant 0 : index
    %0 = vector.load %arg2[%c0, %c0_0] : memref<2x256xf32, #tpu.memory_space<vmem>>, vector<2x256xf32>
    %c0_1 = arith.constant 0 : index
    %c0_2 = arith.constant 0 : index
    %1 = vector.load %arg3[%c0_1, %c0_2] : memref<1x256xf32, #tpu.memory_space<vmem>>, vector<1x256xf32>
    %2 = vector.broadcast %1 : vector<1x256xf32> to vector<2x256xf32>
    %3 = arith.addf %0, %2 : vector<2x256xf32>
    %c0_3 = arith.constant 0 : index
    %c0_4 = arith.constant 0 : index
    %4 = vector.load %arg4[%c0_3, %c0_4] : memref<2x256xf32, #tpu.memory_space<vmem>>, vector<2x256xf32>
    tpu.vector_store %arg4[%c0_3, %c0_4], %3 {strides = array<i32>} : memref<2x256xf32, #tpu.memory_space<vmem>>, vector<2x256xf32>,
    return
  }
  func.func @transform_0(%arg0: i32, %arg1: i32) -> (i32, i32) {
    %c0_i32 = arith.constant 0 : i32
    return %arg1, %arg0 : i32, i32
  }
  func.func @transform_1(%arg0: i32, %arg1: i32) -> (i32, i32) {
    %c0_i32 = arith.constant 0 : i32
    %c0_i32_0 = arith.constant 0 : i32
    return %c0_i32, %arg0 : i32, i32
  }
  func.func @transform_2(%arg0: i32, %arg1: i32) -> (i32, i32) {
    %c0_i32 = arith.constant 0 : i32
    return %arg1, %arg0 : i32, i32
  }
}

</mosaic_0001>

<llo_original>
// kernel: tpu_custom_call.1
$region0: #{tpu_custom_call.1}
  #allocation0 [shape = 'u32[]', space=smem, size = 0x4, offset = 0x4, fixed_abs, tag = 'smem constant byte address 0x4 - core index']
  #allocation1 [shape = 'u32[144,128]{1,0:T(1,128)}', space=vmem, size = 0x12000, scoped, tag = 'internal scratch']
  %s0 = inlined_call_operand.hbm [shape: f32[2,256], index: 0, kind: input, shape index: {}]
  %s1 = inlined_call_operand.vmem [shape: f32[1,256], index: 1, kind: input, shape index: {}]
  %s2 = inlined_call_operand.hbm [shape: f32[2,256], index: 2, kind: output, shape index: {}]
  %s3 = sld [smem:[#allocation0]]
  $region22: #{tpu_custom_call.1} parent=0
    _
  %s5 = ssub.s32 1, %s3
  %s6 = scalar_select 0, %s5, %s3
  $region1: #{tpu_custom_call.1} parent=0
    #allocation2 [shape = 'u8[2048]{0}', space=vmem, size = 0x800, scoped, tag = 'input window, operand 0, single buffered']
    #allocation3 [shape = 's32[1]{0}', space=sflag, size = 0x4, scoped, tag = 'scoped memory for tpu_custom_call.1']
    #allocation4 [shape = 's32[1]{0}', space=sflag, size = 0x4, scoped, tag = 'scoped memory for tpu_custom_call.1']
    #allocation5 [shape = 'u8[2048]{0}', space=vmem, size = 0x800, scoped, tag = 'output window, operand 0, single buffered']
    %7 = vsyncpa [#allocation3], 0
    %8 = vsyncpa [#allocation4], 0
    // Predicated region
    $region2: #{tpu_custom_call.1} parent=1 // pred_check
      _
    $region3: #{tpu_custom_call.1} parent=1 // pred_check_branch
      %10 = sbr.rel (0) target = $region5
    $region4: #{tpu_custom_call.1} parent=1 // pred_region
      %s12 = ssub.s32 64, 64
      %13 = vsyncadd [#allocation3], %s12
      %s15 = sshll.u32 [#allocation2], 4
      %s16 = int_to_ptr.vmem [resolvable:$true] %s15
      %18 = dma.hbm_to_vmem [thread:$0]  %s0, 64, %s16, [#allocation3]
    $region5: #{tpu_custom_call.1} parent=1 // pred_fallthru
      _
    // Predicated region
    $region6: #{tpu_custom_call.1} parent=1 // pred_check
      _
    $region7: #{tpu_custom_call.1} parent=1 // pred_check_branch
      %20 = sbr.rel (0) target = $region9
    $region8: #{tpu_custom_call.1} parent=1 // pred_region
      _
    $region9: #{tpu_custom_call.1} parent=1 // pred_fallthru
      _
    // Predicated region
    $region10: #{tpu_custom_call.1} parent=1 // pred_check
      _
    $region11: #{tpu_custom_call.1} parent=1 // pred_check_branch
      %22 = sbr.rel (0) target = $region13
    $region12: #{tpu_custom_call.1} parent=1 // pred_region
      %23 = dma.done [#allocation3], 64
    $region13: #{tpu_custom_call.1} parent=1 // pred_fallthru
      _
    %v24 = vld [vmem:[#allocation2] sm:$0xf]
    %v25 = vld [vmem:[%s1] sm:$0x3]
    %v27 = vlaneseq
    %v28 = vshrl.u32 %v27, 7
    %v29 = vsub.s32 0, %v28
    %v30 = vrot.slane %v25, %v29
    %v31 = vlaneseq
    %v32 = vshrl.u32 %v31, 7
    %v33 = vsub.s32 1, %v32
    %v34 = vrot.slane %v25, %v33
    %v35 = vcombine.low %v30, %v34
    %v37 = vunpack.c.l.s4 1983009808
    %v38 = vunpack.c.0.s8 %v37
    %v39 = vlaneseq
    %v40 = vshrl.u32 %v39, 7
    %v41 = vsub.s32 %v38, %v40
    %v42 = vrot.slane %v35, %v41
    %v44 = vadd.f32 %v24, %v42
    %45 = vst [vmem:[#allocation5] sm:$0xf] %v44
    // Predicated region
    $region14: #{tpu_custom_call.1} parent=1 // pred_check
      _
    $region15: #{tpu_custom_call.1} parent=1 // pred_check_branch
      %47 = sbr.rel (0) target = $region17
    $region16: #{tpu_custom_call.1} parent=1 // pred_region
      %s49 = ssub.s32 64, 64
      %50 = vsyncadd [#allocation4], %s49
      %s52 = sshll.u32 [#allocation5], 4
      %s53 = int_to_ptr.vmem [resolvable:$true] %s52
      %55 = dma.vmem_to_hbm [thread:$0]  %s53, 64, %s2, [#allocation4]
    $region17: #{tpu_custom_call.1} parent=1 // pred_fallthru
      _
    // Predicated region
    $region18: #{tpu_custom_call.1} parent=1 // pred_check
      _
    $region19: #{tpu_custom_call.1} parent=1 // pred_check_branch
      %57 = sbr.rel (0) target = $region21
    $region20: #{tpu_custom_call.1} parent=1 // pred_region
      %58 = dma.done [#allocation4], 64
    $region21: #{tpu_custom_call.1} parent=1 // pred_fallthru
      _
    %59 = vsyncpa [#allocation3], 1
    %60 = vsyncpa [#allocation4], 1

</llo_original>
